<compile_context>
chip_gen: v5e
topology: v5e:2x2
jax: 0.10.0
libtpu: 0.0.40
codegen_flags: <defaults>
</compile_context>

<pallas_src>
import functools

import jax
import jax.numpy as jnp
from jax.experimental import pallas as pl
from jax.experimental.pallas import tpu as pltpu


def _gat_layer_kernel(xm_ref, adj_ref, w_ref, a_ref, bias_ref,
                      out_ref, attn_ref=None, *,
                      nh, f_out, eps, neg_slope, apply_elu):
    """One batch block of BatchMultiHeadGraphAttention (+ preceding masked IN).

    xm_ref   : (B, n, f_in+1) f32   x with the idex mask appended as last col
    adj_ref  : (B, n, n)      f32
    w_ref    : (f_in, nh*f_out) bf16  head-concatenated projection weight
    a_ref    : (nh*f_out, 2*nh) f32   block-diagonal [a_src | a_dst]
    bias_ref : (1, nh*f_out)  f32     bias tiled per head
    out_ref  : (B, n, nh*f_out) f32   head-concatenated output
    attn_ref : (B, nh, n, n)  f32     only passed for the final layer
    """
    B, n, f_in1 = xm_ref.shape
    f_in = f_in1 - 1
    nf = nh * f_out

    xm = xm_ref[...]
    x = xm[:, :, :f_in]                       # (B, n, f_in)
    m = xm[:, :, f_in:]                       # (B, n, 1)
    adj = adj_ref[...]                        # (B, n, n)

    # ---- masked instance norm over the node axis, per batch element ----
    denom = jnp.sum(m, axis=1, keepdims=True)                      # (B, 1, 1)
    denom = jnp.where(denom > 0, denom, 1.0)
    mean = jnp.sum(x * m, axis=1, keepdims=True) / denom           # (B, 1, f_in)
    var = jnp.sum(((x - mean) * m) ** 2, axis=1, keepdims=True) / denom
    xn = (x - mean) * jax.lax.rsqrt(var + eps)                     # EUP rsqrt

    # ---- projection for all heads: one wide bf16 MXU matmul, M = B*n rows ----
    xn2 = xn.reshape(B * n, f_in).astype(jnp.bfloat16)
    hp = jnp.dot(xn2, w_ref[...],
                 preferred_element_type=jnp.float32)               # (B*n, nf) f32

    # ---- attn_src / attn_dst for all heads in one (f32) matmul ----------
    srcdst = jnp.dot(hp, a_ref[...],
                     preferred_element_type=jnp.float32)           # (B*n, 2*nh)
    srcdst3 = srcdst.reshape(B, n, 2 * nh)
    dst_t = jnp.swapaxes(srcdst3[:, :, nh:], 1, 2)                 # (B, nh, n)

    hp3 = hp.reshape(B, n, nf)                                     # (B, n, nf)

    for h in range(nh):                       # nh is static -> fully unrolled
        att = srcdst3[:, :, h:h + 1] + dst_t[:, h:h + 1, :]        # (B, n, n)
        att = jnp.where(att > 0, att, neg_slope * att)             # LeakyReLU(0.2)
        att = jnp.where(adj == 0.0, -1e12, att)                    # mask non-edges
        att = att - jnp.max(att, axis=-1, keepdims=True)           # stabilize
        e = jnp.exp(att)
        # EUP reciprocal instead of a VPU divide (approx=True would seed
        # divergence from the f32 reference that the next layer's bf16 cast
        # can amplify, so the exact variant is used).
        p = e * pl.reciprocal(jnp.sum(e, axis=-1, keepdims=True))

        if attn_ref is not None:              # only the final layer needs attn
            # TODO(synk): with n=8 this store is 8/128-lane; for larger n flatten
            # the (n, n) tail into lanes for a fully dense attn writeback.
            attn_ref[:, h] = p

        # TODO(synk): attention dropout is identity in eval mode; training-mode
        # dropout is not implemented.
        out_h = jnp.einsum('bij,bjf->bif', p,
                           hp3[:, :, h * f_out:(h + 1) * f_out],
                           preferred_element_type=jnp.float32)     # (B, n, f_out)
        # write straight into the lane offset of the head-concat output block
        # (no jnp.concatenate over heads).
        out_ref[:, :, h * f_out:(h + 1) * f_out] = out_h

    # bias + (optional) ELU applied once on the full-width block
    res = out_ref[...] + bias_ref[...]
    if apply_elu:
        res = jnp.where(res > 0, res, jnp.exp(jnp.minimum(res, 0.0)) - 1.0)
    out_ref[...] = res


def _pick_batch_block(bs, n, f_in, nf, nh, emit_attn,
                      target_rows=128, vmem_budget_bytes=24 << 20):
    """Batch elements per grid step.

    Fill ~target_rows rows of the projection matmul (v5e MXU is 128-wide; 256
    is the sweet spot on v6e/v7x when compute-bound) while keeping the
    double-buffered per-step blocks inside a conservative VMEM budget sized
    against v7x (64 MiB physical / 32 MiB default scoped limit).
    """
    per_elem = n * (f_in + 1) + n * n + n * nf + (nh * n * n if emit_attn else 0)
    per_elem_bytes = 2 * 4 * per_elem          # f32, double-buffered
    b = max(1, min(bs, target_rows // max(n, 1)))
    while b > 1 and b * per_elem_bytes > vmem_budget_bytes:
        b -= 1
    return b


def gat_attention_layer(x, idex, adj, w, a_src, a_dst, bias, *,
                        apply_elu, emit_attn):
    """One BatchMultiHeadGraphAttention layer (with preceding masked IN).

    Output is returned directly in the head-concatenated (bs, n, nh*f_out)
    layout (== transpose(1,2).contiguous().view(bs, n, -1) in PyTorch), with
    ELU fused in-kernel for non-final layers.
    """
    bs, n, f_in = x.shape
    nh, _, f_out = w.shape
    nf = nh * f_out

    b_blk = _pick_batch_block(bs, n, f_in, nf, nh, emit_attn)
    num_blocks = pl.cdiv(bs, b_blk)
    bs_p = num_blocks * b_blk

    # Fold the node-validity mask into x as an appended column: one DMA
    # descriptor per step for the (x, idex) pair instead of two.
    xm = jnp.concatenate(
        [x.astype(jnp.float32), idex[..., None].astype(jnp.float32)], axis=-1)
    adj_f = adj.astype(jnp.float32)
    if bs_p != bs:
        pad = bs_p - bs            # padded entries: idex=0, adj=0 -> sliced off
        xm = jnp.pad(xm, ((0, pad), (0, 0), (0, 0)))
        adj_f = jnp.pad(adj_f, ((0, pad), (0, 0), (0, 0)))

    # Head-concatenated projection weight (f_in, nh*f_out): column block h = w[h].
    w_all = jnp.transpose(w, (1, 0, 2)).reshape(f_in, nf).astype(jnp.bfloat16)
    # Block-diagonal [a_src | a_dst] of shape (nh*f_out, 2*nh): column h
    # (resp. nh+h) holds a_src[h] (resp. a_dst[h]) in rows h*f_out:(h+1)*f_out,
    # zeros elsewhere, so hp @ a_cat yields every head's src/dst logits at once.
    eye = jnp.eye(nh, dtype=jnp.float32)
    src_bd = (a_src[..., 0][:, :, None] * eye[:, None, :]).reshape(nf, nh)
    dst_bd = (a_dst[..., 0][:, :, None] * eye[:, None, :]).reshape(nf, nh)
    a_cat = jnp.concatenate([src_bd, dst_bd], axis=1).astype(jnp.float32)
    bias_row = jnp.tile(bias.reshape(1, f_out).astype(jnp.float32), (1, nh))

    out_shapes = [jax.ShapeDtypeStruct((bs_p, n, nf), jnp.float32)]
    out_specs = [pl.BlockSpec((b_blk, n, nf), lambda b: (b, 0, 0))]
    if emit_attn:
        out_shapes.append(jax.ShapeDtypeStruct((bs_p, nh, n, n), jnp.float32))
        out_specs.append(pl.BlockSpec((b_blk, nh, n, n), lambda b: (b, 0, 0, 0)))

    kernel = functools.partial(_gat_layer_kernel, nh=nh, f_out=f_out,
                               eps=1e-5, neg_slope=0.2, apply_elu=apply_elu)

    result = pl.pallas_call(
        kernel,
        out_shape=tuple(out_shapes),
        grid_spec=pltpu.PrefetchScalarGridSpec(
            num_scalar_prefetch=0,
            grid=(num_blocks,),
            in_specs=[
                pl.BlockSpec((b_blk, n, f_in + 1), lambda b: (b, 0, 0)),
                # NOTE: if adj's DMA is exposed in the trace for large n, bump
                # this spec to pipeline_mode=pl.Buffered(3).
                pl.BlockSpec((b_blk, n, n), lambda b: (b, 0, 0)),
                pl.BlockSpec((f_in, nf), lambda b: (0, 0)),        # resident
                pl.BlockSpec((nf, 2 * nh), lambda b: (0, 0)),      # resident
                pl.BlockSpec((1, nf), lambda b: (0, 0)),           # resident
            ],
            out_specs=out_specs,
        ),
        compiler_params=pltpu.CompilerParams(
            # TODO(synk): on v7x (2 TCs/chip) switch this axis to
            # pltpu.CORE_PARALLEL (gated on chip version) to shard batch blocks
            # across TensorCores; plain "parallel" is a no-op on 1-TC v5e/v6e.
            dimension_semantics=("parallel",)),
    )(xm, adj_f, w_all, a_cat, bias_row)

    if emit_attn:
        out, attn = result
        return out[:bs], attn[:bs]
    (out,) = result
    return out[:bs], None


def gat_forward(params, x, adj, idex):
    """GAT.forward (eval mode). Returns (x, attn.squeeze(1))."""
    n_layer = len(params)
    attn = None
    for i, p in enumerate(params):
        last = i + 1 == n_layer
        # Non-final layers: kernel output is already head-concatenated
        # (bs, n, nh*f_out) with ELU fused (F.dropout is identity in eval).
        # Final layer: nh == 1 (implied by x.squeeze(dim=1) in PyTorch), so
        # (bs, n, f_out) is exactly the squeezed result.
        x, layer_attn = gat_attention_layer(
            x, idex, adj, p["w"], p["a_src"], p["a_dst"], p["bias"],
            apply_elu=not last, emit_attn=last)
        if last:
            attn = layer_attn
    return x, attn.squeeze(axis=1)


# --------------------------- parameter init ---------------------------------

def _xavier_uniform(key, shape, gain):
    # mirrors torch.nn.init.xavier_uniform_ fan computation for >=2D tensors
    receptive = 1
    for d in shape[2:]:
        receptive *= d
    fan_in = shape[1] * receptive
    fan_out = shape[0] * receptive
    bound = gain * (6.0 / (fan_in + fan_out)) ** 0.5
    return jax.random.uniform(key, shape, jnp.float32, -bound, bound)


def init_gat_params(key, n_units, n_heads):
    params = []
    n_layer = len(n_units) - 1
    for i in range(n_layer):
        f_in = n_units[i] * n_heads[i - 1] if i else n_units[i]
        f_out = n_units[i + 1]
        nh = n_heads[i]
        key, k1, k2, k3 = jax.random.split(key, 4)
        params.append(dict(
            w=_xavier_uniform(k1, (nh, f_in, f_out), 1.414),
            a_src=_xavier_uniform(k2, (nh, f_out, 1), 1.414),
            a_dst=_xavier_uniform(k3, (nh, f_out, 1), 1.414),
            bias=jnp.zeros((f_out,), jnp.float32),
        ))
    return params


# --------------------------- pure-JAX reference ------------------------------

def _reference_gat(params, x, adj, idex, eps=1e-5):
    """Reference mirrors the kernel's bf16 projection operands (f32 accum);
    everything else (logits, softmax, attention-apply) is f32 like the kernel.
    Note: rows of adj with no edges produce uniform attention (matches the
    PyTorch softmax of an all -1e12 row); masked-out nodes (idex==0) are still
    projected/attended like in the PyTorch module."""
    bs, n = x.shape[:2]
    n_layer = len(params)
    att = None
    for i, p in enumerate(params):
        m = idex[..., None].astype(jnp.float32)
        denom = jnp.sum(m, axis=1)
        denom = jnp.where(denom > 0, denom, 1.0)
        mean = jnp.sum(x * m, axis=1) / denom
        var = jnp.sum(((x - mean[:, None, :]) * m) ** 2, axis=1) / denom
        xn = (x - mean[:, None, :]) * jax.lax.rsqrt(var[:, None, :] + eps)

        hp = jnp.einsum("bnf,hfo->bhno", xn.astype(jnp.bfloat16),
                        p["w"].astype(jnp.bfloat16),
                        preferred_element_type=jnp.float32)
        s = jnp.einsum("bhno,hoe->bhne", hp, p["a_src"])[..., 0]
        d = jnp.einsum("bhno,hoe->bhne", hp, p["a_dst"])[..., 0]
        att = s[..., :, None] + d[..., None, :]
        att = jnp.where(att > 0, att, 0.2 * att)
        att = jnp.where(adj[:, None, :, :] == 0.0, -1e12, att)
        att = jax.nn.softmax(att, axis=-1)
        out = jnp.einsum("bhij,bhjo->bhio", att, hp,
                         preferred_element_type=jnp.float32) + p["bias"]

        if i + 1 == n_layer:
            x = out.squeeze(axis=1)
        else:
            nh, f_out = p["w"].shape[0], p["w"].shape[2]
            x = jax.nn.elu(
                jnp.transpose(out, (0, 2, 1, 3)).reshape(bs, n, nh * f_out))
    return x, att.squeeze(axis=1)


# ------------------------------------ main -----------------------------------

if __name__ == "__main__":
    key = jax.random.PRNGKey(0)
    n_units = [16, 32, 16]      # GAT(n_units, n_heads, dropout, alpha)
    n_heads = [4, 1]
    bs, n = 2, 8                # bs = timesteps, n = pedestrians

    k_p, k_x, k_a, k_m = jax.random.split(key, 4)
    params = init_gat_params(k_p, n_units, n_heads)

    x = jax.random.normal(k_x, (bs, n, n_units[0]), jnp.float32)
    adj = (jax.random.uniform(k_a, (bs, n, n)) > 0.4).astype(jnp.float32)
    adj = jnp.maximum(adj, jnp.eye(n, dtype=jnp.float32)[None])  # self loops
    idex = (jax.random.uniform(k_m, (bs, n)) > 0.25).astype(jnp.float32)
    idex = idex.at[:, 0].set(1.0)                                # >=1 valid node

    out, attn = gat_forward(params, x, adj, idex)
    out, attn = jax.block_until_ready((out, attn))

    ref_out, ref_attn = _reference_gat(params, x, adj, idex)
    assert out.shape == (bs, n, n_units[-1]) and attn.shape == (bs, n, n)
    assert jnp.allclose(out, ref_out, atol=2e-3, rtol=2e-3), "output mismatch"
    assert jnp.allclose(attn, ref_attn, atol=2e-3, rtol=2e-3), "attn mismatch"
    print("KERNEL_OK")
</pallas_src>

<mosaic_0001>
module attributes {stable_mosaic.version = 11 : i64} {
  func.func @_gat_layer_kernel(%arg0: i32, %arg1: memref<2x8x17xf32, #tpu.memory_space<vmem>>, %arg2: memref<2x8x8xf32, #tpu.memory_space<vmem>>, %arg3: memref<16x128xbf16, #tpu.memory_space<vmem>>, %arg4: memref<128x8xf32, #tpu.memory_space<vmem>>, %arg5: memref<1x128xf32, #tpu.memory_space<vmem>>, %arg6: memref<2x8x128xf32, #tpu.memory_space<vmem>>) attributes {dimension_semantics = [#tpu.dimension_semantics<parallel>], iteration_bounds = array<i64: 1>, scalar_prefetch = 0 : i64, scratch_operands = 0 : i64, tpu.core_type = #tpu.core_type<tc>, window_params = [{transform_indices = @transform_0, window_bounds = array<i64: 2, 8, 17>}, {transform_indices = @transform_1, window_bounds = array<i64: 2, 8, 8>}, {pipeline_mode = #tpu.pipeline_mode<synchronous>, transform_indices = @transform_2, window_bounds = array<i64: 16, 128>}, {pipeline_mode = #tpu.pipeline_mode<synchronous>, transform_indices = @transform_3, window_bounds = array<i64: 128, 8>}, {pipeline_mode = #tpu.pipeline_mode<synchronous>, transform_indices = @transform_4, window_bounds = array<i64: 1, 128>}, {transform_indices = @transform_5, window_bounds = array<i64: 2, 8, 128>}]} {
    %c0 = arith.constant 0 : index
    %c0_0 = arith.constant 0 : index
    %c0_1 = arith.constant 0 : index
    %0 = vector.load %arg1[%c0, %c0_0, %c0_1] : memref<2x8x17xf32, #tpu.memory_space<vmem>>, vector<2x8x17xf32>
    %1 = vector.extract_strided_slice %0 {offsets = [0, 0, 0], sizes = [2, 8, 16], strides = [1, 1, 1]} : vector<2x8x17xf32> to vector<2x8x16xf32>
    %2 = vector.extract_strided_slice %0 {offsets = [0, 0, 16], sizes = [2, 8, 1], strides = [1, 1, 1]} : vector<2x8x17xf32> to vector<2x8x1xf32>
    %c0_2 = arith.constant 0 : index
    %c0_3 = arith.constant 0 : index
    %c0_4 = arith.constant 0 : index
    %3 = vector.load %arg2[%c0_2, %c0_3, %c0_4] : memref<2x8x8xf32, #tpu.memory_space<vmem>>, vector<2x8x8xf32>
    %cst = arith.constant dense<0.000000e+00> : vector<2x1xf32>
    %4 = vector.multi_reduction <add>, %2, %cst [1] : vector<2x8x1xf32> to vector<2x1xf32>
    %5 = vector.shape_cast %4 : vector<2x1xf32> to vector<2x1x1xf32>
    %cst_5 = arith.constant 0.000000e+00 : f32
    %6 = vector.broadcast %cst_5 : f32 to vector<2x1x1xf32>
    %7 = arith.cmpf ogt, %5, %6 : vector<2x1x1xf32>
    %cst_6 = arith.constant 1.000000e+00 : f32
    %8 = vector.broadcast %cst_6 : f32 to vector<2x1x1xf32>
    %9 = arith.select %7, %5, %8 : vector<2x1x1xi1>, vector<2x1x1xf32>
    %10 = vector.broadcast %2 : vector<2x8x1xf32> to vector<2x8x16xf32>
    %11 = arith.mulf %1, %10 : vector<2x8x16xf32>
    %cst_7 = arith.constant dense<0.000000e+00> : vector<2x16xf32>
    %12 = vector.multi_reduction <add>, %11, %cst_7 [1] : vector<2x8x16xf32> to vector<2x16xf32>
    %13 = vector.shape_cast %12 : vector<2x16xf32> to vector<2x1x16xf32>
    %14 = vector.broadcast %9 : vector<2x1x1xf32> to vector<2x1x16xf32>
    %15 = arith.divf %13, %14 : vector<2x1x16xf32>
    %16 = vector.broadcast %15 : vector<2x1x16xf32> to vector<2x8x16xf32>
    %17 = arith.subf %1, %16 : vector<2x8x16xf32>
    %18 = vector.broadcast %2 : vector<2x8x1xf32> to vector<2x8x16xf32>
    %19 = arith.mulf %17, %18 : vector<2x8x16xf32>
    %20 = arith.mulf %19, %19 : vector<2x8x16xf32>
    %cst_8 = arith.constant dense<0.000000e+00> : vector<2x16xf32>
    %21 = vector.multi_reduction <add>, %20, %cst_8 [1] : vector<2x8x16xf32> to vector<2x16xf32>
    %22 = vector.shape_cast %21 : vector<2x16xf32> to vector<2x1x16xf32>
    %23 = vector.broadcast %9 : vector<2x1x1xf32> to vector<2x1x16xf32>
    %24 = arith.divf %22, %23 : vector<2x1x16xf32>
    %25 = vector.broadcast %15 : vector<2x1x16xf32> to vector<2x8x16xf32>
    %26 = arith.subf %1, %25 : vector<2x8x16xf32>
    %cst_9 = arith.constant 9.99999974E-6 : f32
    %27 = vector.broadcast %cst_9 : f32 to vector<2x1x16xf32>
    %28 = arith.addf %24, %27 : vector<2x1x16xf32>
    %29 = math.rsqrt %28 : vector<2x1x16xf32>
    %30 = vector.broadcast %29 : vector<2x1x16xf32> to vector<2x8x16xf32>
    %31 = arith.mulf %26, %30 : vector<2x8x16xf32>
    %32 = vector.shape_cast %31 : vector<2x8x16xf32> to vector<16x16xf32>
    %33 = arith.truncf %32 : vector<16x16xf32> to vector<16x16xbf16>
    %c0_10 = arith.constant 0 : index
    %c0_11 = arith.constant 0 : index
    %34 = vector.load %arg3[%c0_10, %c0_11] : memref<16x128xbf16, #tpu.memory_space<vmem>>, vector<16x128xbf16>
    %cst_12 = arith.constant dense<0.000000e+00> : vector<16x128xf32>
    %35 = tpu.matmul %33, %34, %cst_12 {dimension_numbers = #tpu.dot_dimension_numbers<[1], [0], [0], [1], [0, 0, 1, 1], [], []>} : vector<16x16xbf16>, vector<16x128xbf16>, vector<16x128xf32> -> vector<16x128xf32>
    %c0_13 = arith.constant 0 : index
    %c0_14 = arith.constant 0 : index
    %36 = vector.load %arg4[%c0_13, %c0_14] : memref<128x8xf32, #tpu.memory_space<vmem>>, vector<128x8xf32>
    %cst_15 = arith.constant dense<0.000000e+00> : vector<16x8xf32>
    %37 = tpu.matmul %35, %36, %cst_15 {dimension_numbers = #tpu.dot_dimension_numbers<[1], [0], [0], [1], [0, 0, 1, 1], [], []>} : vector<16x128xf32>, vector<128x8xf32>, vector<16x8xf32> -> vector<16x8xf32>
    %38 = vector.shape_cast %37 : vector<16x8xf32> to vector<2x8x8xf32>
    %39 = vector.extract_strided_slice %38 {offsets = [0, 0, 4], sizes = [2, 8, 4], strides = [1, 1, 1]} : vector<2x8x8xf32> to vector<2x8x4xf32>
    %40 = tpu.transpose %39, [0, 2, 1] : vector<2x8x4xf32> -> vector<2x4x8xf32>
    %41 = vector.shape_cast %35 : vector<16x128xf32> to vector<2x8x128xf32>
    %42 = vector.extract_strided_slice %38 {offsets = [0, 0, 0], sizes = [2, 8, 1], strides = [1, 1, 1]} : vector<2x8x8xf32> to vector<2x8x1xf32>
    %43 = vector.extract_strided_slice %40 {offsets = [0, 0, 0], sizes = [2, 1, 8], strides = [1, 1, 1]} : vector<2x4x8xf32> to vector<2x1x8xf32>
    %44 = vector.broadcast %42 : vector<2x8x1xf32> to vector<2x8x8xf32>
    %45 = vector.broadcast %43 : vector<2x1x8xf32> to vector<2x8x8xf32>
    %46 = arith.addf %44, %45 : vector<2x8x8xf32>
    %cst_16 = arith.constant 0.000000e+00 : f32
    %47 = vector.broadcast %cst_16 : f32 to vector<2x8x8xf32>
    %48 = arith.cmpf ogt, %46, %47 : vector<2x8x8xf32>
    %cst_17 = arith.constant 2.000000e-01 : f32
    %49 = vector.broadcast %cst_17 : f32 to vector<2x8x8xf32>
    %50 = arith.mulf %49, %46 : vector<2x8x8xf32>
    %51 = arith.select %48, %46, %50 : vector<2x8x8xi1>, vector<2x8x8xf32>
    %cst_18 = arith.constant 0.000000e+00 : f32
    %52 = vector.broadcast %cst_18 : f32 to vector<2x8x8xf32>
    %53 = arith.cmpf oeq, %3, %52 : vector<2x8x8xf32>
    %cst_19 = arith.constant -9.99999995E+11 : f32
    %54 = vector.broadcast %cst_19 : f32 to vector<2x8x8xf32>
    %55 = arith.select %53, %54, %51 : vector<2x8x8xi1>, vector<2x8x8xf32>
    %cst_20 = arith.constant dense<0xFF800000> : vector<2x8xf32>
    %56 = vector.multi_reduction <maximumf>, %55, %cst_20 [2] : vector<2x8x8xf32> to vector<2x8xf32>
    %57 = vector.shape_cast %56 : vector<2x8xf32> to vector<2x8x1xf32>
    %58 = vector.broadcast %57 : vector<2x8x1xf32> to vector<2x8x8xf32>
    %59 = arith.subf %55, %58 : vector<2x8x8xf32>
    %60 = math.exp %59 : vector<2x8x8xf32>
    %cst_21 = arith.constant dense<0.000000e+00> : vector<2x8xf32>
    %61 = vector.multi_reduction <add>, %60, %cst_21 [2] : vector<2x8x8xf32> to vector<2x8xf32>
    %62 = vector.shape_cast %61 : vector<2x8xf32> to vector<2x8x1xf32>
    %63 = tpu.reciprocal %62 : vector<2x8x1xf32> -> vector<2x8x1xf32>
    %64 = vector.broadcast %63 : vector<2x8x1xf32> to vector<2x8x8xf32>
    %65 = arith.mulf %60, %64 : vector<2x8x8xf32>
    %66 = vector.extract_strided_slice %41 {offsets = [0, 0, 0], sizes = [2, 8, 32], strides = [1, 1, 1]} : vector<2x8x128xf32> to vector<2x8x32xf32>
    "tpu.trace_start"() <{level = 10 : i32, message = "bij,bjf->bif"}> : () -> ()
    %cst_22 = arith.constant dense<0.000000e+00> : vector<2x8x32xf32>
    %67 = tpu.matmul %65, %66, %cst_22 {dimension_numbers = #tpu.dot_dimension_numbers<[2], [1], [1], [2], [0, 0, 0, 1, 1, 2], [0], [0]>} : vector<2x8x8xf32>, vector<2x8x32xf32>, vector<2x8x32xf32> -> vector<2x8x32xf32>
    "tpu.trace_stop"() : () -> ()
    %c0_23 = arith.constant 0 : index
    %c0_24 = arith.constant 0 : index
    %c0_25 = arith.constant 0 : index
    %68 = vector.load %arg6[%c0_23, %c0_24, %c0_25] : memref<2x8x128xf32, #tpu.memory_space<vmem>>, vector<2x8x32xf32>
    tpu.vector_store %arg6[%c0_23, %c0_24, %c0_25], %67 {strides = array<i32>} : memref<2x8x128xf32, #tpu.memory_space<vmem>>, vector<2x8x32xf32>,
    %69 = vector.extract_strided_slice %38 {offsets = [0, 0, 1], sizes = [2, 8, 1], strides = [1, 1, 1]} : vector<2x8x8xf32> to vector<2x8x1xf32>
    %70 = vector.extract_strided_slice %40 {offsets = [0, 1, 0], sizes = [2, 1, 8], strides = [1, 1, 1]} : vector<2x4x8xf32> to vector<2x1x8xf32>
    %71 = vector.broadcast %69 : vector<2x8x1xf32> to vector<2x8x8xf32>
    %72 = vector.broadcast %70 : vector<2x1x8xf32> to vector<2x8x8xf32>
    %73 = arith.addf %71, %72 : vector<2x8x8xf32>
    %cst_26 = arith.constant 0.000000e+00 : f32
    %74 = vector.broadcast %cst_26 : f32 to vector<2x8x8xf32>
    %75 = arith.cmpf ogt, %73, %74 : vector<2x8x8xf32>
    %cst_27 = arith.constant 2.000000e-01 : f32
    %76 = vector.broadcast %cst_27 : f32 to vector<2x8x8xf32>
    %77 = arith.mulf %76, %73 : vector<2x8x8xf32>
    %78 = arith.select %75, %73, %77 : vector<2x8x8xi1>, vector<2x8x8xf32>
    %cst_28 = arith.constant 0.000000e+00 : f32
    %79 = vector.broadcast %cst_28 : f32 to vector<2x8x8xf32>
    %80 = arith.cmpf oeq, %3, %79 : vector<2x8x8xf32>
    %cst_29 = arith.constant -9.99999995E+11 : f32
    %81 = vector.broadcast %cst_29 : f32 to vector<2x8x8xf32>
    %82 = arith.select %80, %81, %78 : vector<2x8x8xi1>, vector<2x8x8xf32>
    %cst_30 = arith.constant dense<0xFF800000> : vector<2x8xf32>
    %83 = vector.multi_reduction <maximumf>, %82, %cst_30 [2] : vector<2x8x8xf32> to vector<2x8xf32>
    %84 = vector.shape_cast %83 : vector<2x8xf32> to vector<2x8x1xf32>
    %85 = vector.broadcast %84 : vector<2x8x1xf32> to vector<2x8x8xf32>
    %86 = arith.subf %82, %85 : vector<2x8x8xf32>
    %87 = math.exp %86 : vector<2x8x8xf32>
    %cst_31 = arith.constant dense<0.000000e+00> : vector<2x8xf32>
    %88 = vector.multi_reduction <add>, %87, %cst_31 [2] : vector<2x8x8xf32> to vector<2x8xf32>
    %89 = vector.shape_cast %88 : vector<2x8xf32> to vector<2x8x1xf32>
    %90 = tpu.reciprocal %89 : vector<2x8x1xf32> -> vector<2x8x1xf32>
    %91 = vector.broadcast %90 : vector<2x8x1xf32> to vector<2x8x8xf32>
    %92 = arith.mulf %87, %91 : vector<2x8x8xf32>
    %93 = vector.extract_strided_slice %41 {offsets = [0, 0, 32], sizes = [2, 8, 32], strides = [1, 1, 1]} : vector<2x8x128xf32> to vector<2x8x32xf32>
    "tpu.trace_start"() <{level = 10 : i32, message = "bij,bjf->bif"}> : () -> ()
    %cst_32 = arith.constant dense<0.000000e+00> : vector<2x8x32xf32>
    %94 = tpu.matmul %92, %93, %cst_32 {dimension_numbers = #tpu.dot_dimension_numbers<[2], [1], [1], [2], [0, 0, 0, 1, 1, 2], [0], [0]>} : vector<2x8x8xf32>, vector<2x8x32xf32>, vector<2x8x32xf32> -> vector<2x8x32xf32>
    "tpu.trace_stop"() : () -> ()
    %c0_33 = arith.constant 0 : index
    %c0_34 = arith.constant 0 : index
    %c32 = arith.constant 32 : index
    %95 = vector.load %arg6[%c0_33, %c0_34, %c32] : memref<2x8x128xf32, #tpu.memory_space<vmem>>, vector<2x8x32xf32>
    tpu.vector_store %arg6[%c0_33, %c0_34, %c32], %94 {strides = array<i32>} : memref<2x8x128xf32, #tpu.memory_space<vmem>>, vector<2x8x32xf32>,
    %96 = vector.extract_strided_slice %38 {offsets = [0, 0, 2], sizes = [2, 8, 1], strides = [1, 1, 1]} : vector<2x8x8xf32> to vector<2x8x1xf32>
    %97 = vector.extract_strided_slice %40 {offsets = [0, 2, 0], sizes = [2, 1, 8], strides = [1, 1, 1]} : vector<2x4x8xf32> to vector<2x1x8xf32>
    %98 = vector.broadcast %96 : vector<2x8x1xf32> to vector<2x8x8xf32>
    %99 = vector.broadcast %97 : vector<2x1x8xf32> to vector<2x8x8xf32>
    %100 = arith.addf %98, %99 : vector<2x8x8xf32>
    %cst_35 = arith.constant 0.000000e+00 : f32
    %101 = vector.broadcast %cst_35 : f32 to vector<2x8x8xf32>
    %102 = arith.cmpf ogt, %100, %101 : vector<2x8x8xf32>
    %cst_36 = arith.constant 2.000000e-01 : f32
    %103 = vector.broadcast %cst_36 : f32 to vector<2x8x8xf32>
    %104 = arith.mulf %103, %100 : vector<2x8x8xf32>
    %105 = arith.select %102, %100, %104 : vector<2x8x8xi1>, vector<2x8x8xf32>
    %cst_37 = arith.constant 0.000000e+00 : f32
    %106 = vector.broadcast %cst_37 : f32 to vector<2x8x8xf32>
    %107 = arith.cmpf oeq, %3, %106 : vector<2x8x8xf32>
    %cst_38 = arith.constant -9.99999995E+11 : f32
    %108 = vector.broadcast %cst_38 : f32 to vector<2x8x8xf32>
    %109 = arith.select %107, %108, %105 : vector<2x8x8xi1>, vector<2x8x8xf32>
    %cst_39 = arith.constant dense<0xFF800000> : vector<2x8xf32>
    %110 = vector.multi_reduction <maximumf>, %109, %cst_39 [2] : vector<2x8x8xf32> to vector<2x8xf32>
    %111 = vector.shape_cast %110 : vector<2x8xf32> to vector<2x8x1xf32>
    %112 = vector.broadcast %111 : vector<2x8x1xf32> to vector<2x8x8xf32>
    %113 = arith.subf %109, %112 : vector<2x8x8xf32>
    %114 = math.exp %113 : vector<2x8x8xf32>
    %cst_40 = arith.constant dense<0.000000e+00> : vector<2x8xf32>
    %115 = vector.multi_reduction <add>, %114, %cst_40 [2] : vector<2x8x8xf32> to vector<2x8xf32>
    %116 = vector.shape_cast %115 : vector<2x8xf32> to vector<2x8x1xf32>
    %117 = tpu.reciprocal %116 : vector<2x8x1xf32> -> vector<2x8x1xf32>
    %118 = vector.broadcast %117 : vector<2x8x1xf32> to vector<2x8x8xf32>
    %119 = arith.mulf %114, %118 : vector<2x8x8xf32>
    %120 = vector.extract_strided_slice %41 {offsets = [0, 0, 64], sizes = [2, 8, 32], strides = [1, 1, 1]} : vector<2x8x128xf32> to vector<2x8x32xf32>
    "tpu.trace_start"() <{level = 10 : i32, message = "bij,bjf->bif"}> : () -> ()
    %cst_41 = arith.constant dense<0.000000e+00> : vector<2x8x32xf32>
    %121 = tpu.matmul %119, %120, %cst_41 {dimension_numbers = #tpu.dot_dimension_numbers<[2], [1], [1], [2], [0, 0, 0, 1, 1, 2], [0], [0]>} : vector<2x8x8xf32>, vector<2x8x32xf32>, vector<2x8x32xf32> -> vector<2x8x32xf32>
    "tpu.trace_stop"() : () -> ()
    %c0_42 = arith.constant 0 : index
    %c0_43 = arith.constant 0 : index
    %c64 = arith.constant 64 : index
    %122 = vector.load %arg6[%c0_42, %c0_43, %c64] : memref<2x8x128xf32, #tpu.memory_space<vmem>>, vector<2x8x32xf32>
    tpu.vector_store %arg6[%c0_42, %c0_43, %c64], %121 {strides = array<i32>} : memref<2x8x128xf32, #tpu.memory_space<vmem>>, vector<2x8x32xf32>,
    %123 = vector.extract_strided_slice %38 {offsets = [0, 0, 3], sizes = [2, 8, 1], strides = [1, 1, 1]} : vector<2x8x8xf32> to vector<2x8x1xf32>
    %124 = vector.extract_strided_slice %40 {offsets = [0, 3, 0], sizes = [2, 1, 8], strides = [1, 1, 1]} : vector<2x4x8xf32> to vector<2x1x8xf32>
    %125 = vector.broadcast %123 : vector<2x8x1xf32> to vector<2x8x8xf32>
    %126 = vector.broadcast %124 : vector<2x1x8xf32> to vector<2x8x8xf32>
    %127 = arith.addf %125, %126 : vector<2x8x8xf32>
    %cst_44 = arith.constant 0.000000e+00 : f32
    %128 = vector.broadcast %cst_44 : f32 to vector<2x8x8xf32>
    %129 = arith.cmpf ogt, %127, %128 : vector<2x8x8xf32>
    %cst_45 = arith.constant 2.000000e-01 : f32
    %130 = vector.broadcast %cst_45 : f32 to vector<2x8x8xf32>
    %131 = arith.mulf %130, %127 : vector<2x8x8xf32>
    %132 = arith.select %129, %127, %131 : vector<2x8x8xi1>, vector<2x8x8xf32>
    %cst_46 = arith.constant 0.000000e+00 : f32
    %133 = vector.broadcast %cst_46 : f32 to vector<2x8x8xf32>
    %134 = arith.cmpf oeq, %3, %133 : vector<2x8x8xf32>
    %cst_47 = arith.constant -9.99999995E+11 : f32
    %135 = vector.broadcast %cst_47 : f32 to vector<2x8x8xf32>
    %136 = arith.select %134, %135, %132 : vector<2x8x8xi1>, vector<2x8x8xf32>
    %cst_48 = arith.constant dense<0xFF800000> : vector<2x8xf32>
    %137 = vector.multi_reduction <maximumf>, %136, %cst_48 [2] : vector<2x8x8xf32> to vector<2x8xf32>
    %138 = vector.shape_cast %137 : vector<2x8xf32> to vector<2x8x1xf32>
    %139 = vector.broadcast %138 : vector<2x8x1xf32> to vector<2x8x8xf32>
    %140 = arith.subf %136, %139 : vector<2x8x8xf32>
    %141 = math.exp %140 : vector<2x8x8xf32>
    %cst_49 = arith.constant dense<0.000000e+00> : vector<2x8xf32>
    %142 = vector.multi_reduction <add>, %141, %cst_49 [2] : vector<2x8x8xf32> to vector<2x8xf32>
    %143 = vector.shape_cast %142 : vector<2x8xf32> to vector<2x8x1xf32>
    %144 = tpu.reciprocal %143 : vector<2x8x1xf32> -> vector<2x8x1xf32>
    %145 = vector.broadcast %144 : vector<2x8x1xf32> to vector<2x8x8xf32>
    %146 = arith.mulf %141, %145 : vector<2x8x8xf32>
    %147 = vector.extract_strided_slice %41 {offsets = [0, 0, 96], sizes = [2, 8, 32], strides = [1, 1, 1]} : vector<2x8x128xf32> to vector<2x8x32xf32>
    "tpu.trace_start"() <{level = 10 : i32, message = "bij,bjf->bif"}> : () -> ()
    %cst_50 = arith.constant dense<0.000000e+00> : vector<2x8x32xf32>
    %148 = tpu.matmul %146, %147, %cst_50 {dimension_numbers = #tpu.dot_dimension_numbers<[2], [1], [1], [2], [0, 0, 0, 1, 1, 2], [0], [0]>} : vector<2x8x8xf32>, vector<2x8x32xf32>, vector<2x8x32xf32> -> vector<2x8x32xf32>
    "tpu.trace_stop"() : () -> ()
    %c0_51 = arith.constant 0 : index
    %c0_52 = arith.constant 0 : index
    %c96 = arith.constant 96 : index
    %149 = vector.load %arg6[%c0_51, %c0_52, %c96] : memref<2x8x128xf32, #tpu.memory_space<vmem>>, vector<2x8x32xf32>
    tpu.vector_store %arg6[%c0_51, %c0_52, %c96], %148 {strides = array<i32>} : memref<2x8x128xf32, #tpu.memory_space<vmem>>, vector<2x8x32xf32>,
    %c0_53 = arith.constant 0 : index
    %c0_54 = arith.constant 0 : index
    %c0_55 = arith.constant 0 : index
    %150 = vector.load %arg6[%c0_53, %c0_54, %c0_55] : memref<2x8x128xf32, #tpu.memory_space<vmem>>, vector<2x8x128xf32>
    %c0_56 = arith.constant 0 : index
    %c0_57 = arith.constant 0 : index
    %151 = vector.load %arg5[%c0_56, %c0_57] : memref<1x128xf32, #tpu.memory_space<vmem>>, vector<1x128xf32>
    %152 = vector.shape_cast %151 : vector<1x128xf32> to vector<1x1x128xf32>
    %153 = vector.broadcast %152 : vector<1x1x128xf32> to vector<2x8x128xf32>
    %154 = arith.addf %150, %153 : vector<2x8x128xf32>
    %cst_58 = arith.constant 0.000000e+00 : f32
    %155 = vector.broadcast %cst_58 : f32 to vector<2x8x128xf32>
    %156 = arith.cmpf ogt, %154, %155 : vector<2x8x128xf32>
    %cst_59 = arith.constant 0.000000e+00 : f32
    %157 = vector.broadcast %cst_59 : f32 to vector<2x8x128xf32>
    %158 = arith.minimumf %154, %157 : vector<2x8x128xf32>
    %159 = math.exp %158 : vector<2x8x128xf32>
    %cst_60 = arith.constant 1.000000e+00 : f32
    %160 = vector.broadcast %cst_60 : f32 to vector<2x8x128xf32>
    %161 = arith.subf %159, %160 : vector<2x8x128xf32>
    %162 = arith.select %156, %154, %161 : vector<2x8x128xi1>, vector<2x8x128xf32>
    %c0_61 = arith.constant 0 : index
    %c0_62 = arith.constant 0 : index
    %c0_63 = arith.constant 0 : index
    %163 = vector.load %arg6[%c0_61, %c0_62, %c0_63] : memref<2x8x128xf32, #tpu.memory_space<vmem>>, vector<2x8x128xf32>
    tpu.vector_store %arg6[%c0_61, %c0_62, %c0_63], %162 {strides = array<i32>} : memref<2x8x128xf32, #tpu.memory_space<vmem>>, vector<2x8x128xf32>,
    return
  }
  func.func @transform_0(%arg0: i32) -> (i32, i32, i32) {
    %c0_i32 = arith.constant 0 : i32
    %c0_i32_0 = arith.constant 0 : i32
    %c0_i32_1 = arith.constant 0 : i32
    return %arg0, %c0_i32, %c0_i32_0 : i32, i32, i32
  }
  func.func @transform_1(%arg0: i32) -> (i32, i32, i32) {
    %c0_i32 = arith.constant 0 : i32
    %c0_i32_0 = arith.constant 0 : i32
    %c0_i32_1 = arith.constant 0 : i32
    return %arg0, %c0_i32, %c0_i32_0 : i32, i32, i32
  }
  func.func @transform_2(%arg0: i32) -> (i32, i32) {
    %c0_i32 = arith.constant 0 : i32
    %c0_i32_0 = arith.constant 0 : i32
    %c0_i32_1 = arith.constant 0 : i32
    return %c0_i32, %c0_i32_0 : i32, i32
  }
  func.func @transform_3(%arg0: i32) -> (i32, i32) {
    %c0_i32 = arith.constant 0 : i32
    %c0_i32_0 = arith.constant 0 : i32
    %c0_i32_1 = arith.constant 0 : i32
    return %c0_i32, %c0_i32_0 : i32, i32
  }
  func.func @transform_4(%arg0: i32) -> (i32, i32) {
    %c0_i32 = arith.constant 0 : i32
    %c0_i32_0 = arith.constant 0 : i32
    %c0_i32_1 = arith.constant 0 : i32
    return %c0_i32, %c0_i32_0 : i32, i32
  }
  func.func @transform_5(%arg0: i32) -> (i32, i32, i32) {
    %c0_i32 = arith.constant 0 : i32
    %c0_i32_0 = arith.constant 0 : i32
    %c0_i32_1 = arith.constant 0 : i32
    return %arg0, %c0_i32, %c0_i32_0 : i32, i32, i32
  }
}

</mosaic_0001>

<llo_original>
// kernel: tpu_custom_call.1
$region0: #{tpu_custom_call.1}
  #allocation0 [shape = 'u32[]', space=smem, size = 0x4, offset = 0x4, fixed_abs, tag = 'smem constant byte address 0x4 - core index']
  #allocation1 [shape = 'u32[72,128]{1,0:T(1,128)}', space=vmem, size = 0x9000, scoped, tag = 'internal scratch']
  %s0 = inlined_call_operand.vmem [shape: f32[2,8,17], index: 0, kind: input, shape index: {}]
  %s1 = inlined_call_operand.vmem [shape: f32[2,8,8], index: 1, kind: input, shape index: {}]
  %s2 = inlined_call_operand.vmem [shape: bf16[16,128], index: 2, kind: input, shape index: {}]
  %s3 = inlined_call_operand.vmem [shape: f32[128,8], index: 3, kind: input, shape index: {}]
  %s4 = inlined_call_operand.vmem [shape: f32[1,128], index: 4, kind: input, shape index: {}]
  %s5 = inlined_call_operand.hbm [shape: f32[2,8,128], index: 5, kind: output, shape index: {}]
  %s6 = sld [smem:[#allocation0]]
  $region30: #{tpu_custom_call.1} parent=0
    _
  %s8 = ssub.s32 1, %s6
  %s9 = scalar_select 0, %s8, %s6
  $region1: #{tpu_custom_call.1} parent=0
    #allocation2 [shape = 'u8[8192]{0}', space=vmem, size = 0x2000, scoped, tag = 'output window, operand 0, single buffered']
    #allocation3 [shape = 's32[1]{0}', space=sflag, size = 0x4, scoped, tag = 'scoped memory for tpu_custom_call.1']
    %10 = vsyncpa [#allocation3], 0
    // Predicated region
    $region2: #{tpu_custom_call.1} parent=1 // pred_check
      _
    $region3: #{tpu_custom_call.1} parent=1 // pred_check_branch
      %12 = sbr.rel (0) target = $region5
    $region4: #{tpu_custom_call.1} parent=1 // pred_region
      _
    $region5: #{tpu_custom_call.1} parent=1 // pred_fallthru
      _
    // Predicated region
    $region6: #{tpu_custom_call.1} parent=1 // pred_check
      _
    $region7: #{tpu_custom_call.1} parent=1 // pred_check_branch
      %14 = sbr.rel (0) target = $region9
    $region8: #{tpu_custom_call.1} parent=1 // pred_region
      _
    $region9: #{tpu_custom_call.1} parent=1 // pred_fallthru
      _
    // Predicated region
    $region10: #{tpu_custom_call.1} parent=1 // pred_check
      _
    $region11: #{tpu_custom_call.1} parent=1 // pred_check_branch
      %16 = sbr.rel (0) target = $region13
    $region12: #{tpu_custom_call.1} parent=1 // pred_region
      _
    $region13: #{tpu_custom_call.1} parent=1 // pred_fallthru
      _
    // Predicated region
    $region14: #{tpu_custom_call.1} parent=1 // pred_check
      _
    $region15: #{tpu_custom_call.1} parent=1 // pred_check_branch
      %18 = sbr.rel (0) target = $region17
    $region16: #{tpu_custom_call.1} parent=1 // pred_region
      _
    $region17: #{tpu_custom_call.1} parent=1 // pred_fallthru
      _
    // Predicated region
    $region18: #{tpu_custom_call.1} parent=1 // pred_check
      _
    $region19: #{tpu_custom_call.1} parent=1 // pred_check_branch
      %20 = sbr.rel (0) target = $region21
    $region20: #{tpu_custom_call.1} parent=1 // pred_region
      _
    $region21: #{tpu_custom_call.1} parent=1 // pred_fallthru
      _
    %v22 = vld [vmem:[%s0] sm:$0xff]
    %v23 = vld [vmem:[%s0 + $0x8] sm:$0xff]
    %v24 = vld [vmem:[%s1] sm:$0xff]
    %v25 = vld [vmem:[%s1 + $0x8] sm:$0xff]
    %vm26 = vcmask 138368
    %v27 = vsel %vm26, %v22, 0.0
    %v28 = vrot.slane %v27, 4
    %v29 = vadd.f32 %v27, %v28
    %v30 = vrot.slane %v29, 2
    %v31 = vadd.f32 %v29, %v30
    %v32 = vrot.slane %v31, 1
    %v33 = vadd.f32 %v31, %v32
    %v34 = vsel %vm26, %v23, 0.0
    %v35 = vrot.slane %v34, 4
    %v36 = vadd.f32 %v34, %v35
    %v37 = vrot.slane %v36, 2
    %v38 = vadd.f32 %v36, %v37
    %v39 = vrot.slane %v38, 1
    %v40 = vadd.f32 %v38, %v39
    %vm41 = vcmp.gt.f32.partialorder %v33, 0.0
    %vm42 = vcmp.gt.f32.partialorder %v40, 0.0
    %v43 = vsel %vm41, %v33, 1.0
    %v44 = vsel %vm42, %v40, 1.0
    %46 = vset.pattern.permute.xlu0 16
    %47 = vperm.xlu0 %46, %v22
    %v48 = vpop.permute.xlu0 %47
    %51 = vset.pattern.permute.xlu0 16
    %52 = vperm.xlu0 %51, %v23
    %v53 = vpop.permute.xlu0 %52
    %v55 = vmul.f32 %v22, %v48
    %v56 = vmul.f32 %v23, %v53
    %vm57 = vcmask 130048
    %v58 = vsel %vm57, %v55, 0.0
    %v59 = vrot.slane %v58, 4
    %v60 = vadd.f32 %v58, %v59
    %v61 = vrot.slane %v60, 2
    %v62 = vadd.f32 %v60, %v61
    %v63 = vrot.slane %v62, 1
    %v64 = vadd.f32 %v62, %v63
    %v65 = vsel %vm57, %v56, 0.0
    %v66 = vrot.slane %v65, 4
    %v67 = vadd.f32 %v65, %v66
    %v68 = vrot.slane %v67, 2
    %v69 = vadd.f32 %v67, %v68
    %v70 = vrot.slane %v69, 1
    %v71 = vadd.f32 %v69, %v70
    %73 = vset.pattern.permute.xlu0 16
    %74 = vperm.xlu0 %73, %v43
    %v75 = vpop.permute.xlu0 %74
    %78 = vset.pattern.permute.xlu0 16
    %79 = vperm.xlu0 %78, %v44
    %v80 = vpop.permute.xlu0 %79
    %v82 = vrcp.pop %v75
    %v83 = vmul.f32 %v75, %v82
    %v84 = vsub.f32 1.0, %v83
    %v85 = vmul.f32 %v82, %v84
    %v86 = vadd.f32 %v82, %v85
    %vm87 = vweird.f32 %v75
    %vm88 = vweird.f32 %v82
    %vm89 = vmor %vm87, %vm88
    %v90 = vsel %vm89, %v82, %v86
    %v91 = vand.u32 2147483647, %v75
    %vm92 = vcmp.eq.f32.partialorder %v91, 8.507059e+37
    %v93 = vand.u32 %v75, 2147483648
    %v94 = vor.u32 1.1754944e-38, %v93
    %v95 = vsel %vm92, %v94, %v90
    %v96 = vmul.f32 %v64, %v95
    %v97 = vrcp.pop %v80
    %v98 = vmul.f32 %v80, %v97
    %v99 = vsub.f32 1.0, %v98
    %v100 = vmul.f32 %v97, %v99
    %v101 = vadd.f32 %v97, %v100
    %vm102 = vweird.f32 %v80
    %vm103 = vweird.f32 %v97
    %vm104 = vmor %vm102, %vm103
    %v105 = vsel %vm104, %v97, %v101
    %v106 = vand.u32 2147483647, %v80
    %vm107 = vcmp.eq.f32.partialorder %v106, 8.507059e+37
    %v108 = vand.u32 %v80, 2147483648
    %v109 = vor.u32 1.1754944e-38, %v108
    %v110 = vsel %vm107, %v109, %v105
    %v111 = vmul.f32 %v71, %v110
    %v112 = vsub.f32 %v22, %v96
    %v113 = vsub.f32 %v23, %v111
    %v114 = vmul.f32 %v112, %v48
    %v115 = vmul.f32 %v113, %v53
    %v116 = vmul.f32 %v114, %v114
    %v117 = vmul.f32 %v115, %v115
    %v118 = vsel %vm57, %v116, 0.0
    %v119 = vrot.slane %v118, 4
    %v120 = vadd.f32 %v118, %v119
    %v121 = vrot.slane %v120, 2
    %v122 = vadd.f32 %v120, %v121
    %v123 = vrot.slane %v122, 1
    %v124 = vadd.f32 %v122, %v123
    %v125 = vsel %vm57, %v117, 0.0
    %v126 = vrot.slane %v125, 4
    %v127 = vadd.f32 %v125, %v126
    %v128 = vrot.slane %v127, 2
    %v129 = vadd.f32 %v127, %v128
    %v130 = vrot.slane %v129, 1
    %v131 = vadd.f32 %v129, %v130
    %v132 = vmul.f32 %v124, %v95
    %v133 = vmul.f32 %v131, %v110
    %v134 = vadd.f32 %v132, 1e-05
    %v135 = vadd.f32 %v133, 1e-05
    %v136 = vrsqrt.pop %v134
    %v137 = vmul.f32 %v136, %v134
    %v138 = vmul.f32 %v137, %v136
    %v139 = vmul.f32 0.5, %v138
    %v140 = vsub.f32 1.5, %v139
    %v141 = vmul.f32 %v136, %v140
    %vm142 = vweird.f32 %v134
    %vm143 = vweird.f32 %v136
    %vm144 = vmor %vm142, %vm143
    %v145 = vsel %vm144, %v136, %v141
    %v146 = vrsqrt.pop %v135
    %v147 = vmul.f32 %v146, %v135
    %v148 = vmul.f32 %v147, %v146
    %v149 = vmul.f32 0.5, %v148
    %v150 = vsub.f32 1.5, %v149
    %v151 = vmul.f32 %v146, %v150
    %vm152 = vweird.f32 %v135
    %vm153 = vweird.f32 %v146
    %vm154 = vmor %vm152, %vm153
    %v155 = vsel %vm154, %v146, %v151
    %v156 = vmul.f32 %v112, %v145
    %v157 = vmul.f32 %v113, %v155
    %v158 = vpack.c.bf16 %v157, %v156
    %v159 = vld [vmem:[%s2] sm:$0xf]
    %v160 = vld [vmem:[%s2 + $0x4] sm:$0xf]
    %v163 = vunpack.c.l.b16 %v159
    %v164 = vunpack.c.l.b16 %v160
    %v165 = vpack.c.b16 %v164, %v163
    %v168 = vsel %vm57, %v158, 0
    %170 = vmatpush.bf16.msra.mxu0 0
    %171 = vmatpush.bf16.msra.mxu0 0
    %172 = vmatpush.bf16.msra.mxu0 0
    %173 = vmatpush.bf16.msra.mxu0 0
    %174 = vmatpush.bf16.msra.mxu0 0
    %175 = vmatpush.bf16.msra.mxu0 0
    %176 = vmatpush.bf16.msra.mxu0 0
    %177 = vmatpush.bf16.msra.mxu0 %v165
    %178 = vmatmul.bf16.gmra.mxu0 %v168
    %v179 = vpop.f32.mrf.mxu0
    %v180 = vadd.f32 0.0, %v179
    %v181 = vpop.f32.mrf.mxu0
    %v182 = vadd.f32 0.0, %v181
    %183 = vdwg.mxu0
    %v184 = vld [vmem:[%s3] sm:$0xff]
    %v185 = vld [vmem:[%s3 + $0x8] sm:$0xff]
    %v186 = vld [vmem:[%s3 + $0x10] sm:$0xff]
    %v187 = vld [vmem:[%s3 + $0x18] sm:$0xff]
    %v188 = vld [vmem:[%s3 + $0x20] sm:$0xff]
    %v189 = vld [vmem:[%s3 + $0x28] sm:$0xff]
    %v190 = vld [vmem:[%s3 + $0x30] sm:$0xff]
    %v191 = vld [vmem:[%s3 + $0x38] sm:$0xff]
    %v192 = vld [vmem:[%s3 + $0x40] sm:$0xff]
    %v193 = vld [vmem:[%s3 + $0x48] sm:$0xff]
    %v194 = vld [vmem:[%s3 + $0x50] sm:$0xff]
    %v195 = vld [vmem:[%s3 + $0x58] sm:$0xff]
    %v196 = vld [vmem:[%s3 + $0x60] sm:$0xff]
    %v197 = vld [vmem:[%s3 + $0x68] sm:$0xff]
    %v198 = vld [vmem:[%s3 + $0x70] sm:$0xff]
    %v199 = vld [vmem:[%s3 + $0x78] sm:$0xff]
    %200 = vmatpush.msra.mxu0 %v199
    %201 = vmatpush.msra.mxu0 %v198
    %202 = vmatpush.msra.mxu0 %v197
    %203 = vmatpush.msra.mxu0 %v196
    %204 = vmatpush.msra.mxu0 %v195
    %205 = vmatpush.msra.mxu0 %v194
    %206 = vmatpush.msra.mxu0 %v193
    %207 = vmatpush.msra.mxu0 %v192
    %208 = vmatpush.msra.mxu0 %v191
    %209 = vmatpush.msra.mxu0 %v190
    %210 = vmatpush.msra.mxu0 %v189
    %211 = vmatpush.msra.mxu0 %v188
    %212 = vmatpush.msra.mxu0 %v187
    %213 = vmatpush.msra.mxu0 %v186
    %214 = vmatpush.msra.mxu0 %v185
    %215 = vmatpush.msra.mxu0 %v184
    %216 = vmatmul.f32.gmra.mxu0 %v180
    %v217 = vpop.f32.mrf.mxu0
    %v218 = vadd.f32 0.0, %v217
    %219 = vmatmul.f32.gmra.mxu0 %v182
    %v220 = vpop.f32.mrf.mxu0
    %v221 = vadd.f32 0.0, %v220
    %222 = vdwg.mxu0
    %225 = vrot.lane.b32.xlu0 %v218, 124
    %v226 = vpop.permute.xlu0 %225
    %227 = vrot.lane.b32.xlu0 %v221, 124
    %v228 = vpop.permute.xlu0 %227
    %231 = vxpose.xlu0.b32.start [1/16] %v226, 128
    %232 = vxpose.xlu0.b32.cont [2/16] 0.0, 128
    %233 = vxpose.xlu0.b32.cont [3/16] 0.0, 128
    %234 = vxpose.xlu0.b32.cont [4/16] 0.0, 128
    %235 = vxpose.xlu0.b32.cont [5/16] 0.0, 128
    %236 = vxpose.xlu0.b32.cont [6/16] 0.0, 128
    %237 = vxpose.xlu0.b32.cont [7/16] 0.0, 128
    %238 = vxpose.xlu0.b32.cont [8/16] 0.0, 128
    %239 = vxpose.xlu0.b32.cont [9/16] 0.0, 128
    %240 = vxpose.xlu0.b32.cont [10/16] 0.0, 128
    %241 = vxpose.xlu0.b32.cont [11/16] 0.0, 128
    %242 = vxpose.xlu0.b32.cont [12/16] 0.0, 128
    %243 = vxpose.xlu0.b32.cont [13/16] 0.0, 128
    %244 = vxpose.xlu0.b32.cont [14/16] 0.0, 128
    %245 = vxpose.xlu0.b32.cont [15/16] 0.0, 128
    %246 = vxpose.xlu0.b32.end [16/16] 0.0, 128
    %v247 = vpop.trf.xlu0
    %v248 = vpop.trf.xlu0
    %v249 = vpop.trf.xlu0
    %v250 = vpop.trf.xlu0
    %v251 = vpop.trf.xlu0
    %v252 = vpop.trf.xlu0
    %v253 = vpop.trf.xlu0
    %v254 = vpop.trf.xlu0
    %v255 = vpop.trf.xlu0
    %v256 = vpop.trf.xlu0
    %v257 = vpop.trf.xlu0
    %v258 = vpop.trf.xlu0
    %v259 = vpop.trf.xlu0
    %v260 = vpop.trf.xlu0
    %v261 = vpop.trf.xlu0
    %v262 = vpop.trf.xlu0
    %263 = vxpose.xlu0.b32.start [1/16] %v228, 128
    %264 = vxpose.xlu0.b32.cont [2/16] 0.0, 128
    %265 = vxpose.xlu0.b32.cont [3/16] 0.0, 128
    %266 = vxpose.xlu0.b32.cont [4/16] 0.0, 128
    %267 = vxpose.xlu0.b32.cont [5/16] 0.0, 128
    %268 = vxpose.xlu0.b32.cont [6/16] 0.0, 128
    %269 = vxpose.xlu0.b32.cont [7/16] 0.0, 128
    %270 = vxpose.xlu0.b32.cont [8/16] 0.0, 128
    %271 = vxpose.xlu0.b32.cont [9/16] 0.0, 128
    %272 = vxpose.xlu0.b32.cont [10/16] 0.0, 128
    %273 = vxpose.xlu0.b32.cont [11/16] 0.0, 128
    %274 = vxpose.xlu0.b32.cont [12/16] 0.0, 128
    %275 = vxpose.xlu0.b32.cont [13/16] 0.0, 128
    %276 = vxpose.xlu0.b32.cont [14/16] 0.0, 128
    %277 = vxpose.xlu0.b32.cont [15/16] 0.0, 128
    %278 = vxpose.xlu0.b32.end [16/16] 0.0, 128
    %v279 = vpop.trf.xlu0
    %v280 = vpop.trf.xlu0
    %v281 = vpop.trf.xlu0
    %v282 = vpop.trf.xlu0
    %v283 = vpop.trf.xlu0
    %v284 = vpop.trf.xlu0
    %v285 = vpop.trf.xlu0
    %v286 = vpop.trf.xlu0
    %v287 = vpop.trf.xlu0
    %v288 = vpop.trf.xlu0
    %v289 = vpop.trf.xlu0
    %v290 = vpop.trf.xlu0
    %v291 = vpop.trf.xlu0
    %v292 = vpop.trf.xlu0
    %v293 = vpop.trf.xlu0
    %v294 = vpop.trf.xlu0
    %295 = vset.pattern.permute.xlu0 0
    %296 = vperm.xlu0 %295, %v218
    %v297 = vpop.permute.xlu0 %296
    %299 = vset.pattern.permute.xlu0 0
    %300 = vperm.xlu0 %299, %v221
    %v301 = vpop.permute.xlu0 %300
    %v303 = vperm.slane %v247, 0
    %v304 = vperm.slane %v279, 0
    %v305 = vadd.f32 %v297, %v303
    %v306 = vadd.f32 %v301, %v304
    %vm307 = vcmp.gt.f32.partialorder %v305, 0.0
    %vm308 = vcmp.gt.f32.partialorder %v306, 0.0
    %v309 = vmul.f32 %v305, 0.2
    %v310 = vmul.f32 %v306, 0.2
    %v311 = vsel %vm307, %v305, %v309
    %v312 = vsel %vm308, %v306, %v310
    %vm313 = vcmp.eq.f32.partialorder %v24, 0.0
    %vm314 = vcmp.eq.f32.partialorder %v25, 0.0
    %v315 = vsel %vm313, -1e+12, %v311
    %v316 = vsel %vm314, -1e+12, %v312
    %vm317 = vcmask 64512
    %v318 = vsel %vm317, %v315, -inf
    %319 = vmax.xlane.f32.xlu0 %v318
    %v320 = vpop.xlane.xlu0 %319
    %v321 = vsel %vm317, %v316, -inf
    %322 = vmax.xlane.f32.xlu0 %v321
    %v323 = vpop.xlane.xlu0 %322
    %v324 = vsub.f32 %v315, %v320
    %v325 = vsub.f32 %v316, %v323
    %v326 = vmul.f32 %v324, 1.442695
    %v327 = vpow.pop %v326
    %v328 = vmul.f32 %v325, 1.442695
    %v329 = vpow.pop %v328
    %v330 = vsel %vm317, %v327, 0.0
    %331 = vadd.xlane.f32.xlu0 %v330
    %v332 = vpop.xlane.xlu0 %331
    %v333 = vsel %vm317, %v329, 0.0
    %334 = vadd.xlane.f32.xlu0 %v333
    %v335 = vpop.xlane.xlu0 %334
    %v336 = vrcp.pop %v332
    %v337 = vmul.f32 %v332, %v336
    %v338 = vsub.f32 1.0, %v337
    %v339 = vmul.f32 %v336, %v338
    %v340 = vadd.f32 %v336, %v339
    %vm341 = vweird.f32 %v332
    %vm342 = vweird.f32 %v336
    %vm343 = vmor %vm341, %vm342
    %v344 = vsel %vm343, %v336, %v340
    %v345 = vand.u32 2147483647, %v332
    %vm346 = vcmp.eq.f32.partialorder %v345, 8.507059e+37
    %v347 = vand.u32 %v332, 2147483648
    %v348 = vor.u32 1.1754944e-38, %v347
    %v349 = vsel %vm346, %v348, %v344
    %v350 = vrcp.pop %v335
    %v351 = vmul.f32 %v335, %v350
    %v352 = vsub.f32 1.0, %v351
    %v353 = vmul.f32 %v350, %v352
    %v354 = vadd.f32 %v350, %v353
    %vm355 = vweird.f32 %v335
    %vm356 = vweird.f32 %v350
    %vm357 = vmor %vm355, %vm356
    %v358 = vsel %vm357, %v350, %v354
    %v359 = vand.u32 2147483647, %v335
    %vm360 = vcmp.eq.f32.partialorder %v359, 8.507059e+37
    %v361 = vand.u32 %v335, 2147483648
    %v362 = vor.u32 1.1754944e-38, %v361
    %v363 = vsel %vm360, %v362, %v358
    %v364 = vmul.f32 %v327, %v349
    %v365 = vmul.f32 %v329, %v363
    %v367 = vsel %vm317, %v364, 0
    %369 = vmatpush.msra.mxu0 0.0
    %370 = vmatpush.msra.mxu0 0.0
    %371 = vmatpush.msra.mxu0 0.0
    %372 = vmatpush.msra.mxu0 0.0
    %373 = vmatpush.msra.mxu0 0.0
    %374 = vmatpush.msra.mxu0 0.0
    %375 = vmatpush.msra.mxu0 0.0
    %376 = vmatpush.msra.mxu0 0.0
    %377 = vmatpush.msra.mxu0 0.0
    %378 = vmatpush.msra.mxu0 0.0
    %379 = vmatpush.msra.mxu0 0.0
    %380 = vmatpush.msra.mxu0 0.0
    %381 = vmatpush.msra.mxu0 0.0
    %382 = vmatpush.msra.mxu0 0.0
    %383 = vmatpush.msra.mxu0 0.0
    %384 = vmatpush.msra.mxu0 %v180
    %385 = vmatmul.f32.gmra.mxu0 %v367
    %v386 = vpop.f32.mrf.mxu0
    %v387 = vadd.f32 0.0, %v386
    %388 = vdwg.mxu0
    %v390 = vsel %vm317, %v365, 0
    %392 = vmatpush.msra.mxu0 0.0
    %393 = vmatpush.msra.mxu0 0.0
    %394 = vmatpush.msra.mxu0 0.0
    %395 = vmatpush.msra.mxu0 0.0
    %396 = vmatpush.msra.mxu0 0.0
    %397 = vmatpush.msra.mxu0 0.0
    %398 = vmatpush.msra.mxu0 0.0
    %399 = vmatpush.msra.mxu0 0.0
    %400 = vmatpush.msra.mxu0 0.0
    %401 = vmatpush.msra.mxu0 0.0
    %402 = vmatpush.msra.mxu0 0.0
    %403 = vmatpush.msra.mxu0 0.0
    %404 = vmatpush.msra.mxu0 0.0
    %405 = vmatpush.msra.mxu0 0.0
    %406 = vmatpush.msra.mxu0 0.0
    %407 = vmatpush.msra.mxu0 %v182
    %408 = vmatmul.f32.gmra.mxu0 %v390
    %v409 = vpop.f32.mrf.mxu0
    %v410 = vadd.f32 0.0, %v409
    %411 = vdwg.mxu0
    %vm412 = vcmask 261120
    %413 = vst.msk [vmem:[#allocation2] sm:$0xff] %vm412, %v387
    %414 = vst.msk [vmem:[#allocation2 + $0x8] sm:$0xff] %vm412, %v410
    %415 = vset.pattern.permute.xlu0 1
    %416 = vperm.xlu0 %415, %v218
    %v417 = vpop.permute.xlu0 %416
    %419 = vset.pattern.permute.xlu0 1
    %420 = vperm.xlu0 %419, %v221
    %v421 = vpop.permute.xlu0 %420
    %v423 = vperm.slane %v247, 1
    %v424 = vperm.slane %v279, 1
    %v425 = vadd.f32 %v417, %v423
    %v426 = vadd.f32 %v421, %v424
    %vm427 = vcmp.gt.f32.partialorder %v425, 0.0
    %vm428 = vcmp.gt.f32.partialorder %v426, 0.0
    %v429 = vmul.f32 %v425, 0.2
    %v430 = vmul.f32 %v426, 0.2
    %v431 = vsel %vm427, %v425, %v429
    %v432 = vsel %vm428, %v426, %v430
    %v433 = vsel %vm313, -1e+12, %v431
    %v434 = vsel %vm314, -1e+12, %v432
    %v435 = vsel %vm317, %v433, -inf
    %436 = vmax.xlane.f32.xlu0 %v435
    %v437 = vpop.xlane.xlu0 %436
    %v438 = vsel %vm317, %v434, -inf
    %439 = vmax.xlane.f32.xlu0 %v438
    %v440 = vpop.xlane.xlu0 %439
    %v441 = vsub.f32 %v433, %v437
    %v442 = vsub.f32 %v434, %v440
    %v443 = vmul.f32 %v441, 1.442695
    %v444 = vpow.pop %v443
    %v445 = vmul.f32 %v442, 1.442695
    %v446 = vpow.pop %v445
    %v447 = vsel %vm317, %v444, 0.0
    %448 = vadd.xlane.f32.xlu0 %v447
    %v449 = vpop.xlane.xlu0 %448
    %v450 = vsel %vm317, %v446, 0.0
    %451 = vadd.xlane.f32.xlu0 %v450
    %v452 = vpop.xlane.xlu0 %451
    %v453 = vrcp.pop %v449
    %v454 = vmul.f32 %v449, %v453
    %v455 = vsub.f32 1.0, %v454
    %v456 = vmul.f32 %v453, %v455
    %v457 = vadd.f32 %v453, %v456
    %vm458 = vweird.f32 %v449
    %vm459 = vweird.f32 %v453
    %vm460 = vmor %vm458, %vm459
    %v461 = vsel %vm460, %v453, %v457
    %v462 = vand.u32 2147483647, %v449
    %vm463 = vcmp.eq.f32.partialorder %v462, 8.507059e+37
    %v464 = vand.u32 %v449, 2147483648
    %v465 = vor.u32 1.1754944e-38, %v464
    %v466 = vsel %vm463, %v465, %v461
    %v467 = vrcp.pop %v452
    %v468 = vmul.f32 %v452, %v467
    %v469 = vsub.f32 1.0, %v468
    %v470 = vmul.f32 %v467, %v469
    %v471 = vadd.f32 %v467, %v470
    %vm472 = vweird.f32 %v452
    %vm473 = vweird.f32 %v467
    %vm474 = vmor %vm472, %vm473
    %v475 = vsel %vm474, %v467, %v471
    %v476 = vand.u32 2147483647, %v452
    %vm477 = vcmp.eq.f32.partialorder %v476, 8.507059e+37
    %v478 = vand.u32 %v452, 2147483648
    %v479 = vor.u32 1.1754944e-38, %v478
    %v480 = vsel %vm477, %v479, %v475
    %v481 = vmul.f32 %v444, %v466
    %v482 = vmul.f32 %v446, %v480
    %484 = vrot.lane.b32.xlu0 %v180, 96
    %v485 = vpop.permute.xlu0 %484
    %v488 = vsel %vm317, %v481, 0
    %490 = vmatpush.msra.mxu0 0.0
    %491 = vmatpush.msra.mxu0 0.0
    %492 = vmatpush.msra.mxu0 0.0
    %493 = vmatpush.msra.mxu0 0.0
    %494 = vmatpush.msra.mxu0 0.0
    %495 = vmatpush.msra.mxu0 0.0
    %496 = vmatpush.msra.mxu0 0.0
    %497 = vmatpush.msra.mxu0 0.0
    %498 = vmatpush.msra.mxu0 0.0
    %499 = vmatpush.msra.mxu0 0.0
    %500 = vmatpush.msra.mxu0 0.0
    %501 = vmatpush.msra.mxu0 0.0
    %502 = vmatpush.msra.mxu0 0.0
    %503 = vmatpush.msra.mxu0 0.0
    %504 = vmatpush.msra.mxu0 0.0
    %505 = vmatpush.msra.mxu0 %v485
    %506 = vmatmul.f32.gmra.mxu0 %v488
    %v507 = vpop.f32.mrf.mxu0
    %v508 = vadd.f32 0.0, %v507
    %509 = vdwg.mxu0
    %511 = vrot.lane.b32.xlu0 %v182, 96
    %v512 = vpop.permute.xlu0 %511
    %v515 = vsel %vm317, %v482, 0
    %517 = vmatpush.msra.mxu0 0.0
    %518 = vmatpush.msra.mxu0 0.0
    %519 = vmatpush.msra.mxu0 0.0
    %520 = vmatpush.msra.mxu0 0.0
    %521 = vmatpush.msra.mxu0 0.0
    %522 = vmatpush.msra.mxu0 0.0
    %523 = vmatpush.msra.mxu0 0.0
    %524 = vmatpush.msra.mxu0 0.0
    %525 = vmatpush.msra.mxu0 0.0
    %526 = vmatpush.msra.mxu0 0.0
    %527 = vmatpush.msra.mxu0 0.0
    %528 = vmatpush.msra.mxu0 0.0
    %529 = vmatpush.msra.mxu0 0.0
    %530 = vmatpush.msra.mxu0 0.0
    %531 = vmatpush.msra.mxu0 0.0
    %532 = vmatpush.msra.mxu0 %v512
    %533 = vmatmul.f32.gmra.mxu0 %v515
    %v534 = vpop.f32.mrf.mxu0
    %v535 = vadd.f32 0.0, %v534
    %536 = vdwg.mxu0
    %539 = vrot.lane.b32.xlu0 %v508, 32
    %v540 = vpop.permute.xlu0 %539
    %541 = vrot.lane.b32.xlu0 %v535, 32
    %v542 = vpop.permute.xlu0 %541
    %vm545 = vcmask 523520
    %546 = vst.msk [vmem:[#allocation2] sm:$0xff] %vm545, %v540
    %547 = vst.msk [vmem:[#allocation2 + $0x8] sm:$0xff] %vm545, %v542
    %548 = vset.pattern.permute.xlu0 2
    %549 = vperm.xlu0 %548, %v218
    %v550 = vpop.permute.xlu0 %549
    %552 = vset.pattern.permute.xlu0 2
    %553 = vperm.xlu0 %552, %v221
    %v554 = vpop.permute.xlu0 %553
    %v556 = vperm.slane %v247, 2
    %v557 = vperm.slane %v279, 2
    %v558 = vadd.f32 %v550, %v556
    %v559 = vadd.f32 %v554, %v557
    %vm560 = vcmp.gt.f32.partialorder %v558, 0.0
    %vm561 = vcmp.gt.f32.partialorder %v559, 0.0
    %v562 = vmul.f32 %v558, 0.2
    %v563 = vmul.f32 %v559, 0.2
    %v564 = vsel %vm560, %v558, %v562
    %v565 = vsel %vm561, %v559, %v563
    %v566 = vsel %vm313, -1e+12, %v564
    %v567 = vsel %vm314, -1e+12, %v565
    %v568 = vsel %vm317, %v566, -inf
    %569 = vmax.xlane.f32.xlu0 %v568
    %v570 = vpop.xlane.xlu0 %569
    %v571 = vsel %vm317, %v567, -inf
    %572 = vmax.xlane.f32.xlu0 %v571
    %v573 = vpop.xlane.xlu0 %572
    %v574 = vsub.f32 %v566, %v570
    %v575 = vsub.f32 %v567, %v573
    %v576 = vmul.f32 %v574, 1.442695
    %v577 = vpow.pop %v576
    %v578 = vmul.f32 %v575, 1.442695
    %v579 = vpow.pop %v578
    %v580 = vsel %vm317, %v577, 0.0
    %581 = vadd.xlane.f32.xlu0 %v580
    %v582 = vpop.xlane.xlu0 %581
    %v583 = vsel %vm317, %v579, 0.0
    %584 = vadd.xlane.f32.xlu0 %v583
    %v585 = vpop.xlane.xlu0 %584
    %v586 = vrcp.pop %v582
    %v587 = vmul.f32 %v582, %v586
    %v588 = vsub.f32 1.0, %v587
    %v589 = vmul.f32 %v586, %v588
    %v590 = vadd.f32 %v586, %v589
    %vm591 = vweird.f32 %v582
    %vm592 = vweird.f32 %v586
    %vm593 = vmor %vm591, %vm592
    %v594 = vsel %vm593, %v586, %v590
    %v595 = vand.u32 2147483647, %v582
    %vm596 = vcmp.eq.f32.partialorder %v595, 8.507059e+37
    %v597 = vand.u32 %v582, 2147483648
    %v598 = vor.u32 1.1754944e-38, %v597
    %v599 = vsel %vm596, %v598, %v594
    %v600 = vrcp.pop %v585
    %v601 = vmul.f32 %v585, %v600
    %v602 = vsub.f32 1.0, %v601
    %v603 = vmul.f32 %v600, %v602
    %v604 = vadd.f32 %v600, %v603
    %vm605 = vweird.f32 %v585
    %vm606 = vweird.f32 %v600
    %vm607 = vmor %vm605, %vm606
    %v608 = vsel %vm607, %v600, %v604
    %v609 = vand.u32 2147483647, %v585
    %vm610 = vcmp.eq.f32.partialorder %v609, 8.507059e+37
    %v611 = vand.u32 %v585, 2147483648
    %v612 = vor.u32 1.1754944e-38, %v611
    %v613 = vsel %vm610, %v612, %v608
    %v614 = vmul.f32 %v577, %v599
    %v615 = vmul.f32 %v579, %v613
    %616 = vrot.lane.b32.xlu0 %v180, 64
    %v617 = vpop.permute.xlu0 %616
    %v620 = vsel %vm317, %v614, 0
    %622 = vmatpush.msra.mxu0 0.0
    %623 = vmatpush.msra.mxu0 0.0
    %624 = vmatpush.msra.mxu0 0.0
    %625 = vmatpush.msra.mxu0 0.0
    %626 = vmatpush.msra.mxu0 0.0
    %627 = vmatpush.msra.mxu0 0.0
    %628 = vmatpush.msra.mxu0 0.0
    %629 = vmatpush.msra.mxu0 0.0
    %630 = vmatpush.msra.mxu0 0.0
    %631 = vmatpush.msra.mxu0 0.0
    %632 = vmatpush.msra.mxu0 0.0
    %633 = vmatpush.msra.mxu0 0.0
    %634 = vmatpush.msra.mxu0 0.0
    %635 = vmatpush.msra.mxu0 0.0
    %636 = vmatpush.msra.mxu0 0.0
    %637 = vmatpush.msra.mxu0 %v617
    %638 = vmatmul.f32.gmra.mxu0 %v620
    %v639 = vpop.f32.mrf.mxu0
    %v640 = vadd.f32 0.0, %v639
    %641 = vdwg.mxu0
    %642 = vrot.lane.b32.xlu0 %v182, 64
    %v643 = vpop.permute.xlu0 %642
    %v646 = vsel %vm317, %v615, 0
    %648 = vmatpush.msra.mxu0 0.0
    %649 = vmatpush.msra.mxu0 0.0
    %650 = vmatpush.msra.mxu0 0.0
    %651 = vmatpush.msra.mxu0 0.0
    %652 = vmatpush.msra.mxu0 0.0
    %653 = vmatpush.msra.mxu0 0.0
    %654 = vmatpush.msra.mxu0 0.0
    %655 = vmatpush.msra.mxu0 0.0
    %656 = vmatpush.msra.mxu0 0.0
    %657 = vmatpush.msra.mxu0 0.0
    %658 = vmatpush.msra.mxu0 0.0
    %659 = vmatpush.msra.mxu0 0.0
    %660 = vmatpush.msra.mxu0 0.0
    %661 = vmatpush.msra.mxu0 0.0
    %662 = vmatpush.msra.mxu0 0.0
    %663 = vmatpush.msra.mxu0 %v643
    %664 = vmatmul.f32.gmra.mxu0 %v646
    %v665 = vpop.f32.mrf.mxu0
    %v666 = vadd.f32 0.0, %v665
    %667 = vdwg.mxu0
    %670 = vrot.lane.b32.xlu0 %v640, 64
    %v671 = vpop.permute.xlu0 %670
    %672 = vrot.lane.b32.xlu0 %v666, 64
    %v673 = vpop.permute.xlu0 %672
    %vm676 = vcmask 785920
    %677 = vst.msk [vmem:[#allocation2] sm:$0xff] %vm676, %v671
    %678 = vst.msk [vmem:[#allocation2 + $0x8] sm:$0xff] %vm676, %v673
    %679 = vset.pattern.permute.xlu0 3
    %680 = vperm.xlu0 %679, %v218
    %v681 = vpop.permute.xlu0 %680
    %683 = vset.pattern.permute.xlu0 3
    %684 = vperm.xlu0 %683, %v221
    %v685 = vpop.permute.xlu0 %684
    %v687 = vperm.slane %v247, 3
    %v688 = vperm.slane %v279, 3
    %v689 = vadd.f32 %v681, %v687
    %v690 = vadd.f32 %v685, %v688
    %vm691 = vcmp.gt.f32.partialorder %v689, 0.0
    %vm692 = vcmp.gt.f32.partialorder %v690, 0.0
    %v693 = vmul.f32 %v689, 0.2
    %v694 = vmul.f32 %v690, 0.2
    %v695 = vsel %vm691, %v689, %v693
    %v696 = vsel %vm692, %v690, %v694
    %v697 = vsel %vm313, -1e+12, %v695
    %v698 = vsel %vm314, -1e+12, %v696
    %v699 = vsel %vm317, %v697, -inf
    %700 = vmax.xlane.f32.xlu0 %v699
    %v701 = vpop.xlane.xlu0 %700
    %v702 = vsel %vm317, %v698, -inf
    %703 = vmax.xlane.f32.xlu0 %v702
    %v704 = vpop.xlane.xlu0 %703
    %v705 = vsub.f32 %v697, %v701
    %v706 = vsub.f32 %v698, %v704
    %v707 = vmul.f32 %v705, 1.442695
    %v708 = vpow.pop %v707
    %v709 = vmul.f32 %v706, 1.442695
    %v710 = vpow.pop %v709
    %v711 = vsel %vm317, %v708, 0.0
    %712 = vadd.xlane.f32.xlu0 %v711
    %v713 = vpop.xlane.xlu0 %712
    %v714 = vsel %vm317, %v710, 0.0
    %715 = vadd.xlane.f32.xlu0 %v714
    %v716 = vpop.xlane.xlu0 %715
    %v717 = vrcp.pop %v713
    %v718 = vmul.f32 %v713, %v717
    %v719 = vsub.f32 1.0, %v718
    %v720 = vmul.f32 %v717, %v719
    %v721 = vadd.f32 %v717, %v720
    %vm722 = vweird.f32 %v713
    %vm723 = vweird.f32 %v717
    %vm724 = vmor %vm722, %vm723
    %v725 = vsel %vm724, %v717, %v721
    %v726 = vand.u32 2147483647, %v713
    %vm727 = vcmp.eq.f32.partialorder %v726, 8.507059e+37
    %v728 = vand.u32 %v713, 2147483648
    %v729 = vor.u32 1.1754944e-38, %v728
    %v730 = vsel %vm727, %v729, %v725
    %v731 = vrcp.pop %v716
    %v732 = vmul.f32 %v716, %v731
    %v733 = vsub.f32 1.0, %v732
    %v734 = vmul.f32 %v731, %v733
    %v735 = vadd.f32 %v731, %v734
    %vm736 = vweird.f32 %v716
    %vm737 = vweird.f32 %v731
    %vm738 = vmor %vm736, %vm737
    %v739 = vsel %vm738, %v731, %v735
    %v740 = vand.u32 2147483647, %v716
    %vm741 = vcmp.eq.f32.partialorder %v740, 8.507059e+37
    %v742 = vand.u32 %v716, 2147483648
    %v743 = vor.u32 1.1754944e-38, %v742
    %v744 = vsel %vm741, %v743, %v739
    %v745 = vmul.f32 %v708, %v730
    %v746 = vmul.f32 %v710, %v744
    %747 = vrot.lane.b32.xlu0 %v180, 32
    %v748 = vpop.permute.xlu0 %747
    %v751 = vsel %vm317, %v745, 0
    %753 = vmatpush.msra.mxu0 0.0
    %754 = vmatpush.msra.mxu0 0.0
    %755 = vmatpush.msra.mxu0 0.0
    %756 = vmatpush.msra.mxu0 0.0
    %757 = vmatpush.msra.mxu0 0.0
    %758 = vmatpush.msra.mxu0 0.0
    %759 = vmatpush.msra.mxu0 0.0
    %760 = vmatpush.msra.mxu0 0.0
    %761 = vmatpush.msra.mxu0 0.0
    %762 = vmatpush.msra.mxu0 0.0
    %763 = vmatpush.msra.mxu0 0.0
    %764 = vmatpush.msra.mxu0 0.0
    %765 = vmatpush.msra.mxu0 0.0
    %766 = vmatpush.msra.mxu0 0.0
    %767 = vmatpush.msra.mxu0 0.0
    %768 = vmatpush.msra.mxu0 %v748
    %769 = vmatmul.f32.gmra.mxu0 %v751
    %v770 = vpop.f32.mrf.mxu0
    %v771 = vadd.f32 0.0, %v770
    %772 = vdwg.mxu0
    %773 = vrot.lane.b32.xlu0 %v182, 32
    %v774 = vpop.permute.xlu0 %773
    %v777 = vsel %vm317, %v746, 0
    %779 = vmatpush.msra.mxu0 0.0
    %780 = vmatpush.msra.mxu0 0.0
    %781 = vmatpush.msra.mxu0 0.0
    %782 = vmatpush.msra.mxu0 0.0
    %783 = vmatpush.msra.mxu0 0.0
    %784 = vmatpush.msra.mxu0 0.0
    %785 = vmatpush.msra.mxu0 0.0
    %786 = vmatpush.msra.mxu0 0.0
    %787 = vmatpush.msra.mxu0 0.0
    %788 = vmatpush.msra.mxu0 0.0
    %789 = vmatpush.msra.mxu0 0.0
    %790 = vmatpush.msra.mxu0 0.0
    %791 = vmatpush.msra.mxu0 0.0
    %792 = vmatpush.msra.mxu0 0.0
    %793 = vmatpush.msra.mxu0 0.0
    %794 = vmatpush.msra.mxu0 %v774
    %795 = vmatmul.f32.gmra.mxu0 %v777
    %v796 = vpop.f32.mrf.mxu0
    %v797 = vadd.f32 0.0, %v796
    %798 = vdwg.mxu0
    %801 = vrot.lane.b32.xlu0 %v771, 96
    %v802 = vpop.permute.xlu0 %801
    %803 = vrot.lane.b32.xlu0 %v797, 96
    %v804 = vpop.permute.xlu0 %803
    %vm807 = vcmask 1048320
    %808 = vst.msk [vmem:[#allocation2] sm:$0xff] %vm807, %v802
    %809 = vst.msk [vmem:[#allocation2 + $0x8] sm:$0xff] %vm807, %v804
    %v810 = vld [vmem:[#allocation2] sm:$0xff]
    %v811 = vld [vmem:[#allocation2 + $0x8] sm:$0xff]
    %v812 = vld [vmem:[%s4] sm:$0x1]
    %v814 = vperm.slane %v812, 0
    %v816 = vadd.f32 %v810, %v814
    %v817 = vadd.f32 %v811, %v814
    %vm818 = vcmp.gt.f32.partialorder %v816, 0.0
    %vm819 = vcmp.gt.f32.partialorder %v817, 0.0
    %v820 = vmin.f32 %v816, 0.0
    %v821 = vmin.f32 %v817, 0.0
    %v822 = vmul.f32 %v820, 1.442695
    %v823 = vpow.pop %v822
    %v824 = vmul.f32 %v821, 1.442695
    %v825 = vpow.pop %v824
    %v826 = vsub.f32 %v823, 1.0
    %v827 = vsub.f32 %v825, 1.0
    %v828 = vsel %vm818, %v816, %v826
    %v829 = vsel %vm819, %v817, %v827
    %830 = vst [vmem:[#allocation2] sm:$0xff] %v828
    %831 = vst [vmem:[#allocation2 + $0x8] sm:$0xff] %v829
    // Predicated region
    $region22: #{tpu_custom_call.1} parent=1 // pred_check
      _
    $region23: #{tpu_custom_call.1} parent=1 // pred_check_branch
      %833 = sbr.rel (0) target = $region25
    $region24: #{tpu_custom_call.1} parent=1 // pred_region
      %835 = vsyncadd [#allocation3], 0
      %s836 = sshll.u32 [#allocation2], 4
      %s837 = int_to_ptr.vmem [resolvable:$true] %s836
      %s838 = sshll.u32 %s5, 4
      %s839 = int_to_ptr.hbm [resolvable:$true] %s838
      %844 = dma.vmem_to_hbm [thread:$0]  %s837, 256, %s839, [#allocation3], 128, 128, 8
    $region25: #{tpu_custom_call.1} parent=1 // pred_fallthru
      _
    // Predicated region
    $region26: #{tpu_custom_call.1} parent=1 // pred_check
      _
    $region27: #{tpu_custom_call.1} parent=1 // pred_check_branch
      %846 = sbr.rel (0) target = $region29
    $region28: #{tpu_custom_call.1} parent=1 // pred_region
      %848 = dma.done [#allocation3], 256
    $region29: #{tpu_custom_call.1} parent=1 // pred_fallthru
      _
    %849 = vsyncpa [#allocation3], 1

</llo_original>
